<compile_context>
chip_gen: v7x
topology: tpu7x:2x2x1
jax: 0.10.0
libtpu: 0.0.40
codegen_flags: <defaults>
</compile_context>

<pallas_src>
import functools

import jax
import jax.numpy as jnp
from jax.experimental import pallas as pl
from jax.experimental.pallas import tpu as pltpu

LANE = 128


def _sublane_multiple(dtype) -> int:
    """Packed-tile sublane multiple: f32 -> 8, bf16/f16 -> 16, int8/bool -> 32."""
    itemsize = jnp.dtype(dtype).itemsize
    return max(8, 32 // max(1, itemsize))


def _detect_num_parts(default=2) -> int:
    """2-way core split only where it helps (2 TensorCores per chip, v7x)."""
    try:
        info = pltpu.get_tpu_info()
    except Exception:
        return default
    for name in ("num_tensorcores", "tensorcores_per_chip", "num_cores",
                 "cores_per_chip", "core_count"):
        v = getattr(info, name, None)
        if isinstance(v, int) and v >= 1:
            return max(1, min(int(v), 2))
    return default


def _pick_chunk(br: int, mult: int) -> int:
    """Inner-loop row chunk: multiple of the dtype sublane granule, divides br."""
    for c in (512, 256, 128, 64, 32, 16, 8):
        if c >= mult and c % mult == 0 and br % c == 0:
            return c
    return br


def _dice_kernel(x_ref, t_ref, o_ref, acc_ref, *, nblocks, tail_rows, chunk):
    p = pl.program_id(0)
    s = pl.program_id(1)
    nsteps = pl.num_programs(1)
    blk = p * nsteps + s  # global block index handled by this grid step

    @pl.when(s == 0)
    def _init():
        acc_ref[...] = jnp.zeros_like(acc_ref)

    br, lane = x_ref.shape

    def fold(a, r):
        # (r, lane) -> (8, lane): tile-preserving reshape + pure VPU vreg adds.
        return jnp.sum(a.reshape(r // 8, 8, lane), axis=0)

    def accumulate_full():
        # Fast path: no per-element masking.  Chunked inner loop keeps
        # temporaries in vregs instead of materializing full-block f32 arrays.
        def body(i, carry):
            s_bt, s_b, s_t = carry
            r0 = pl.multiple_of(i * chunk, chunk)
            xv = x_ref[pl.ds(r0, chunk), :]
            tv = t_ref[pl.ds(r0, chunk), :].astype(jnp.float32)
            bv = jnp.where(xv >= 0, 1.0, 0.0)  # sigmoid(x) >= 0.5  <=>  x >= 0
            return (s_bt + fold(bv * tv, chunk),
                    s_b + fold(bv, chunk),
                    s_t + fold(tv, chunk))

        init = (jnp.zeros((8, lane), jnp.float32),
                jnp.zeros((8, lane), jnp.float32),
                jnp.zeros((8, lane), jnp.float32))
        s_bt, s_b, s_t = jax.lax.fori_loop(0, br // chunk, body, init)
        acc_ref[0] += s_bt   # intersection
        acc_ref[1] += s_b    # sum(binarized inputs)
        acc_ref[2] += s_t    # sum(targets)

    def accumulate_tail():
        # Masked path: runs for at most ONE (ragged) block per kernel call.
        row_iota = jax.lax.broadcasted_iota(jnp.int32, (br, lane), 0)
        valid = row_iota < tail_rows
        xv = x_ref[...]
        tv = jnp.where(valid, t_ref[...].astype(jnp.float32), 0.0)
        bv = jnp.where(valid & (xv >= 0), 1.0, 0.0)
        acc_ref[0] += fold(bv * tv, br)
        acc_ref[1] += fold(bv, br)
        acc_ref[2] += fold(tv, br)

    if tail_rows == br:
        # No ragged tail: every in-range block takes the fast path; clamped
        # duplicate blocks (from the core split) are skipped entirely.
        @pl.when(blk < nblocks)
        def _():
            accumulate_full()
    else:
        @pl.when(blk < nblocks - 1)
        def _():
            accumulate_full()

        @pl.when(blk == nblocks - 1)
        def _():
            accumulate_tail()

    @pl.when(s == nsteps - 1)
    def _fin():
        # One cross-sublane (XLU) reduce per part: (3, 8, lane) -> (3, lane).
        o_ref[0] = jnp.sum(acc_ref[...], axis=1)


def dice_score(inputs, targets, smooth=1.0, block_rows=8192):
    x = jnp.ravel(inputs)
    t = jnp.ravel(targets)
    n = x.shape[0]

    mult = max(_sublane_multiple(x.dtype), _sublane_multiple(t.dtype))
    granule = mult * LANE
    pad = (-n) % granule
    if pad:
        # Sentinel pad: x = -1 binarizes to 0 (x >= 0 is False), t = 0, so the
        # padded tail contributes nothing and needs no in-kernel masking.
        x = jnp.pad(x, (0, pad), constant_values=-1)
        t = jnp.pad(t, (0, pad), constant_values=0)
    rows = (n + pad) // LANE

    num_parts = _detect_num_parts()

    # Dtype-aware block-row rounding + VMEM-footprint cap (v7x: 64 MiB VMEM).
    per_row_bytes = LANE * (x.dtype.itemsize + t.dtype.itemsize)
    br = min(int(block_rows), rows)
    br = max(mult, (br // mult) * mult)
    max_br = max(mult, (((24 << 20) // (2 * per_row_bytes)) // mult) * mult)
    br = min(br, max_br)

    nblocks = pl.cdiv(rows, br)
    steps = pl.cdiv(nblocks, num_parts)
    tail_rows = rows - (nblocks - 1) * br    # rows valid in the last block
    chunk = _pick_chunk(br, mult)

    x2 = x.reshape(rows, LANE)               # free: contiguous reshape
    t2 = t.reshape(rows, LANE)

    def in_map(p, s):
        b = p * steps + s
        # Clamp the (at most one) over-coverage block from the core split;
        # it is skipped in-kernel by the blk < nblocks scalar guard.
        return (jnp.minimum(b, nblocks - 1), 0)

    bytes_per_block = br * per_row_bytes
    vmem_limit = int(min(max(2 * bytes_per_block + (4 << 20), 16 << 20), 32 << 20))

    parts = pl.pallas_call(
        functools.partial(_dice_kernel, nblocks=nblocks, tail_rows=tail_rows,
                          chunk=chunk),
        out_shape=jax.ShapeDtypeStruct((num_parts, 3, LANE), jnp.float32),
        grid_spec=pltpu.PrefetchScalarGridSpec(
            num_scalar_prefetch=0,
            grid=(num_parts, steps),
            in_specs=[
                pl.BlockSpec((br, LANE), in_map),
                pl.BlockSpec((br, LANE), in_map),
            ],
            out_specs=pl.BlockSpec((1, 3, LANE), lambda p, s: (p, 0, 0)),
            scratch_shapes=[pltpu.VMEM((3, 8, LANE), jnp.float32)],
        ),
        compiler_params=pltpu.CompilerParams(
            dimension_semantics=("parallel", "arbitrary"),
            vmem_limit_bytes=vmem_limit,
        ),
    )(x2, t2)

    # Tiny epilogue in plain JAX: combine per-part / per-lane partial sums,
    # dice formula, and torch.nansum on a 0-d tensor (NaN -> 0).
    sums = jnp.sum(parts, axis=(0, 2))  # (3,)
    inter, si, st = sums[0], sums[1], sums[2]
    d = (2.0 * inter + smooth) / (si + st + smooth)
    return jnp.where(jnp.isnan(d), 0.0, d)


def dice_score_ref(inputs, targets, smooth=1.0):
    x = jax.nn.sigmoid(jnp.ravel(inputs).astype(jnp.float32))
    b = jnp.where(x >= 0.5, 1.0, 0.0)
    t = jnp.ravel(targets).astype(jnp.float32)
    inter = jnp.sum(b * t)
    d = (2.0 * inter + smooth) / (jnp.sum(b) + jnp.sum(t) + smooth)
    return jnp.where(jnp.isnan(d), 0.0, d)


if __name__ == "__main__":
    key = jax.random.PRNGKey(0)
    k1, k2, k3, k4 = jax.random.split(key, 4)

    # 1) NCHW logits + binary targets, exact granule multiple (no padding path).
    x = jax.random.normal(k1, (2, 4, 16, 16), dtype=jnp.float32)
    tgt = (jax.random.uniform(k2, (2, 4, 16, 16)) > 0.5).astype(jnp.float32)
    out = jax.block_until_ready(jax.jit(dice_score)(x, tgt))
    ref = dice_score_ref(x, tgt)
    assert jnp.allclose(out, ref, atol=1e-5, rtol=1e-5), (out, ref)

    # 2) Ragged element count: exercises the sentinel-pad path.
    x2 = jax.random.normal(k3, (3, 5, 7, 11), dtype=jnp.float32)
    t2 = (jax.random.uniform(k4, (3, 5, 7, 11)) > 0.5).astype(jnp.float32)
    out2 = jax.block_until_ready(jax.jit(dice_score)(x2, t2))
    ref2 = dice_score_ref(x2, t2)
    assert jnp.allclose(out2, ref2, atol=1e-5, rtol=1e-5), (out2, ref2)

    # 3) Multi-block grid with a ragged tail block + core-split clamp guard.
    x3 = jax.random.normal(k1, (2, 3, 16, 32), dtype=jnp.float32)  # 3072 elems
    t3 = (jax.random.uniform(k2, (2, 3, 16, 32)) > 0.5).astype(jnp.float32)
    out3 = jax.block_until_ready(
        jax.jit(functools.partial(dice_score, block_rows=16))(x3, t3))
    ref3 = dice_score_ref(x3, t3)
    assert jnp.allclose(out3, ref3, atol=1e-5, rtol=1e-5), (out3, ref3)

    # 4) bf16 logits: exercises dtype-aware (16,128) tiling; targets stay f32.
    x4 = jax.random.normal(k3, (2, 4, 16, 16), dtype=jnp.bfloat16)
    t4 = (jax.random.uniform(k4, (2, 4, 16, 16)) > 0.5).astype(jnp.float32)
    out4 = jax.block_until_ready(jax.jit(dice_score)(x4, t4))
    ref4 = dice_score_ref(x4, t4)
    assert jnp.allclose(out4, ref4, atol=1e-5, rtol=1e-5), (out4, ref4)

    print("KERNEL_OK")
</pallas_src>

<mosaic_0001>
module attributes {stable_mosaic.version = 11 : i64} {
  func.func @_dice_kernel(%arg0: i32, %arg1: i32, %arg2: memref<16x128xf32, #tpu.memory_space<vmem>>, %arg3: memref<16x128xf32, #tpu.memory_space<vmem>>, %arg4: memref<1x3x128xf32, #tpu.memory_space<vmem>>, %arg5: memref<3x8x128xf32, #tpu.memory_space<vmem>>) attributes {dimension_semantics = [#tpu.dimension_semantics<parallel>, #tpu.dimension_semantics<arbitrary>], iteration_bounds = array<i64: 2, 1>, scalar_prefetch = 0 : i64, scratch_operands = 1 : i64, tpu.core_type = #tpu.core_type<tc>, window_params = [{transform_indices = @transform_0, window_bounds = array<i64: 16, 128>}, {transform_indices = @transform_1, window_bounds = array<i64: 16, 128>}, {transform_indices = @transform_2, window_bounds = array<i64: 1, 3, 128>}]} {
    %c1_i32 = arith.constant 1 : i32
    %0 = arith.muli %arg0, %c1_i32 : i32
    %1 = arith.addi %0, %arg1 : i32
    %c0_i32 = arith.constant 0 : i32
    %2 = arith.cmpi eq, %arg1, %c0_i32 : i32
    %3 = arith.extui %2 : i1 to i32
    %c0_i32_0 = arith.constant 0 : i32
    %4 = arith.cmpi ne, %3, %c0_i32_0 : i32
    scf.if %4 {
      %cst = arith.constant 0.000000e+00 : f32
      %11 = vector.broadcast %cst : f32 to vector<3x8x128xf32>
      %c0 = arith.constant 0 : index
      %c0_5 = arith.constant 0 : index
      %c0_6 = arith.constant 0 : index
      %12 = vector.load %arg5[%c0, %c0_5, %c0_6] : memref<3x8x128xf32, #tpu.memory_space<vmem>>, vector<3x8x128xf32>
      tpu.vector_store %arg5[%c0, %c0_5, %c0_6], %11 {strides = array<i32>} : memref<3x8x128xf32, #tpu.memory_space<vmem>>, vector<3x8x128xf32>,
    } else {
    }
    %c1_i32_1 = arith.constant 1 : i32
    %5 = arith.cmpi slt, %1, %c1_i32_1 : i32
    %6 = arith.extui %5 : i1 to i32
    %c0_i32_2 = arith.constant 0 : i32
    %7 = arith.cmpi ne, %6, %c0_i32_2 : i32
    scf.if %7 {
      %cst = arith.constant 0.000000e+00 : f32
      %11 = vector.broadcast %cst : f32 to vector<8x128xf32>
      %cst_5 = arith.constant 0.000000e+00 : f32
      %12 = vector.broadcast %cst_5 : f32 to vector<8x128xf32>
      %cst_6 = arith.constant 0.000000e+00 : f32
      %13 = vector.broadcast %cst_6 : f32 to vector<8x128xf32>
      %c0_i32_7 = arith.constant 0 : i32
      %c16_i32 = arith.constant 16 : i32
      %14 = arith.muli %c0_i32_7, %c16_i32 : i32
      %15 = tpu.assume_multiple %14, 16 : i32
      %16 = arith.index_cast %15 : i32 to index
      %c0 = arith.constant 0 : index
      %17 = vector.load %arg2[%16, %c0] : memref<16x128xf32, #tpu.memory_space<vmem>>, vector<16x128xf32>
      %18 = arith.index_cast %15 : i32 to index
      %c0_8 = arith.constant 0 : index
      %19 = vector.load %arg3[%18, %c0_8] : memref<16x128xf32, #tpu.memory_space<vmem>>, vector<16x128xf32>
      %cst_9 = arith.constant 0.000000e+00 : f32
      %20 = vector.broadcast %cst_9 : f32 to vector<16x128xf32>
      %21 = arith.cmpf oge, %17, %20 : vector<16x128xf32>
      %cst_10 = arith.constant 1.000000e+00 : f32
      %cst_11 = arith.constant 0.000000e+00 : f32
      %22 = vector.broadcast %cst_10 : f32 to vector<16x128xf32>
      %23 = vector.broadcast %cst_11 : f32 to vector<16x128xf32>
      %24 = arith.select %21, %22, %23 : vector<16x128xi1>, vector<16x128xf32>
      %25 = arith.mulf %24, %19 : vector<16x128xf32>
      %26 = vector.shape_cast %25 : vector<16x128xf32> to vector<2x8x128xf32>
      %cst_12 = arith.constant dense<0.000000e+00> : vector<8x128xf32>
      %27 = vector.multi_reduction <add>, %26, %cst_12 [0] : vector<2x8x128xf32> to vector<8x128xf32>
      %28 = arith.addf %11, %27 : vector<8x128xf32>
      %29 = vector.shape_cast %24 : vector<16x128xf32> to vector<2x8x128xf32>
      %cst_13 = arith.constant dense<0.000000e+00> : vector<8x128xf32>
      %30 = vector.multi_reduction <add>, %29, %cst_13 [0] : vector<2x8x128xf32> to vector<8x128xf32>
      %31 = arith.addf %12, %30 : vector<8x128xf32>
      %32 = vector.shape_cast %19 : vector<16x128xf32> to vector<2x8x128xf32>
      %cst_14 = arith.constant dense<0.000000e+00> : vector<8x128xf32>
      %33 = vector.multi_reduction <add>, %32, %cst_14 [0] : vector<2x8x128xf32> to vector<8x128xf32>
      %34 = arith.addf %13, %33 : vector<8x128xf32>
      %c1_i32_15 = arith.constant 1 : i32
      %c0_16 = arith.constant 0 : index
      %c0_17 = arith.constant 0 : index
      %c0_18 = arith.constant 0 : index
      %35 = vector.load %arg5[%c0_16, %c0_17, %c0_18] : memref<3x8x128xf32, #tpu.memory_space<vmem>>, vector<1x8x128xf32>
      %36 = vector.shape_cast %35 : vector<1x8x128xf32> to vector<8x128xf32>
      %37 = arith.addf %36, %28 : vector<8x128xf32>
      %c0_19 = arith.constant 0 : index
      %c0_20 = arith.constant 0 : index
      %c0_21 = arith.constant 0 : index
      %38 = vector.load %arg5[%c0_19, %c0_20, %c0_21] : memref<3x8x128xf32, #tpu.memory_space<vmem>>, vector<1x8x128xf32>
      %39 = vector.shape_cast %38 : vector<1x8x128xf32> to vector<8x128xf32>
      %40 = vector.shape_cast %37 : vector<8x128xf32> to vector<1x8x128xf32>
      tpu.vector_store %arg5[%c0_19, %c0_20, %c0_21], %40 {strides = array<i32>} : memref<3x8x128xf32, #tpu.memory_space<vmem>>, vector<1x8x128xf32>,
      %c1 = arith.constant 1 : index
      %c0_22 = arith.constant 0 : index
      %c0_23 = arith.constant 0 : index
      %41 = vector.load %arg5[%c1, %c0_22, %c0_23] : memref<3x8x128xf32, #tpu.memory_space<vmem>>, vector<1x8x128xf32>
      %42 = vector.shape_cast %41 : vector<1x8x128xf32> to vector<8x128xf32>
      %43 = arith.addf %42, %31 : vector<8x128xf32>
      %c1_24 = arith.constant 1 : index
      %c0_25 = arith.constant 0 : index
      %c0_26 = arith.constant 0 : index
      %44 = vector.load %arg5[%c1_24, %c0_25, %c0_26] : memref<3x8x128xf32, #tpu.memory_space<vmem>>, vector<1x8x128xf32>
      %45 = vector.shape_cast %44 : vector<1x8x128xf32> to vector<8x128xf32>
      %46 = vector.shape_cast %43 : vector<8x128xf32> to vector<1x8x128xf32>
      tpu.vector_store %arg5[%c1_24, %c0_25, %c0_26], %46 {strides = array<i32>} : memref<3x8x128xf32, #tpu.memory_space<vmem>>, vector<1x8x128xf32>,
      %c2 = arith.constant 2 : index
      %c0_27 = arith.constant 0 : index
      %c0_28 = arith.constant 0 : index
      %47 = vector.load %arg5[%c2, %c0_27, %c0_28] : memref<3x8x128xf32, #tpu.memory_space<vmem>>, vector<1x8x128xf32>
      %48 = vector.shape_cast %47 : vector<1x8x128xf32> to vector<8x128xf32>
      %49 = arith.addf %48, %34 : vector<8x128xf32>
      %c2_29 = arith.constant 2 : index
      %c0_30 = arith.constant 0 : index
      %c0_31 = arith.constant 0 : index
      %50 = vector.load %arg5[%c2_29, %c0_30, %c0_31] : memref<3x8x128xf32, #tpu.memory_space<vmem>>, vector<1x8x128xf32>
      %51 = vector.shape_cast %50 : vector<1x8x128xf32> to vector<8x128xf32>
      %52 = vector.shape_cast %49 : vector<8x128xf32> to vector<1x8x128xf32>
      tpu.vector_store %arg5[%c2_29, %c0_30, %c0_31], %52 {strides = array<i32>} : memref<3x8x128xf32, #tpu.memory_space<vmem>>, vector<1x8x128xf32>,
    } else {
    }
    %c0_i32_3 = arith.constant 0 : i32
    %8 = arith.cmpi eq, %arg1, %c0_i32_3 : i32
    %9 = arith.extui %8 : i1 to i32
    %c0_i32_4 = arith.constant 0 : i32
    %10 = arith.cmpi ne, %9, %c0_i32_4 : i32
    scf.if %10 {
      %c0 = arith.constant 0 : index
      %c0_5 = arith.constant 0 : index
      %c0_6 = arith.constant 0 : index
      %11 = vector.load %arg5[%c0, %c0_5, %c0_6] : memref<3x8x128xf32, #tpu.memory_space<vmem>>, vector<3x8x128xf32>
      %cst = arith.constant dense<0.000000e+00> : vector<3x128xf32>
      %12 = vector.multi_reduction <add>, %11, %cst [1] : vector<3x8x128xf32> to vector<3x128xf32>
      %c0_7 = arith.constant 0 : index
      %c0_8 = arith.constant 0 : index
      %c0_9 = arith.constant 0 : index
      %13 = vector.load %arg4[%c0_7, %c0_8, %c0_9] : memref<1x3x128xf32, #tpu.memory_space<vmem>>, vector<1x3x128xf32>
      %14 = vector.shape_cast %13 : vector<1x3x128xf32> to vector<3x128xf32>
      %15 = vector.shape_cast %12 : vector<3x128xf32> to vector<1x3x128xf32>
      tpu.vector_store %arg4[%c0_7, %c0_8, %c0_9], %15 {strides = array<i32>} : memref<1x3x128xf32, #tpu.memory_space<vmem>>, vector<1x3x128xf32>,
    } else {
    }
    return
  }
  func.func @transform_0(%arg0: i32, %arg1: i32) -> (i32, i32) {
    %c1_i32 = arith.constant 1 : i32
    %0 = arith.muli %arg0, %c1_i32 : i32
    %1 = arith.addi %0, %arg1 : i32
    %c0_i32 = arith.constant 0 : i32
    %2 = arith.minsi %1, %c0_i32 : i32
    %c0_i32_0 = arith.constant 0 : i32
    %c0_i32_1 = arith.constant 0 : i32
    return %2, %c0_i32_0 : i32, i32
  }
  func.func @transform_1(%arg0: i32, %arg1: i32) -> (i32, i32) {
    %c1_i32 = arith.constant 1 : i32
    %0 = arith.muli %arg0, %c1_i32 : i32
    %1 = arith.addi %0, %arg1 : i32
    %c0_i32 = arith.constant 0 : i32
    %2 = arith.minsi %1, %c0_i32 : i32
    %c0_i32_0 = arith.constant 0 : i32
    %c0_i32_1 = arith.constant 0 : i32
    return %2, %c0_i32_0 : i32, i32
  }
  func.func @transform_2(%arg0: i32, %arg1: i32) -> (i32, i32, i32) {
    %c0_i32 = arith.constant 0 : i32
    %c0_i32_0 = arith.constant 0 : i32
    %c0_i32_1 = arith.constant 0 : i32
    return %arg0, %c0_i32, %c0_i32_0 : i32, i32, i32
  }
}

</mosaic_0001>

<llo_original>
// kernel: dice_score.1
$region0: #{dice_score.1}
  #allocation0 [shape = 'u32[]', space=smem, size = 0x4, offset = 0x4, fixed_abs, tag = 'smem constant byte address 0x4 - core index']
  #allocation1 [shape = 'u32[144,128]{1,0:T(1,128)}', space=vmem, size = 0x12000, scoped, tag = 'internal scratch']
  #allocation2 [shape = 'f32[3,8,128]{2,1,0:T(8,128)}', space=vmem, size = 0x3000, scoped, tag = 'scratch operand']
  %s0 = inlined_call_operand.vmem [shape: f32[16,128], index: 0, kind: input, shape index: {}]
  %s1 = inlined_call_operand.vmem [shape: f32[16,128], index: 1, kind: input, shape index: {}]
  %s2 = inlined_call_operand.vmem [shape: f32[2,3,128], index: 2, kind: output, shape index: {}]
  %s3 = sld [smem:[#allocation0]]
  $region53: #{dice_score.1} parent=0
    _
  %s5 = ssub.s32 1, %s3
  %s6 = scalar_select 0, %s5, %s3
  loop: start=0, step=1, limit=4
  $region2: #{dice_score.1} parent=0 // loop_pre_header
    _
  $region3: #{dice_score.1} parent=0 // loop_header
    %s8 = sphi 0, %s12
    %p9 = scmp.ge.s32.totalorder %s8, 4
    %s15 = sphi 0, %s27
    %s16 = sphi 0, %s23
    %s17 = sphi 0, %s15
    %s18 = sphi 0, %s16
    %s19 = sphi 0, %s17
    %s20 = sphi 0, %s18
    %s36 = sphi 0, %s38
    %s39 = sphi 0, %s36
    %s40 = sphi 0, %s39
    %s56 = sphi 0, %s40
    %s68 = sphi 0, %s70
    %s71 = sphi 0, %s68
    %s72 = sphi 0, %s71
    %s88 = sphi 0, %s72
    %s94 = sphi 0, %s96
    %s97 = sphi 0, %s94
    %s98 = sphi 0, %s97
    %s114 = sphi 0, %s98
  $region4: #{dice_score.1} parent=0 // loop_header_branch
    %11 = sbr.rel (%p9) target = $region8
  $region5: #{dice_score.1} parent=0 // loop_body
    %s13 = ssub.s32 %s8, 1
    %s14 = ssub.s32 %s8, 2
    %s21 = sadd.s32 1, %s16
    %p22 = scmp.ge.s32.totalorder %s21, 1
    %s23 = scalar_select %p22, 0, %s21
    %s24 = sadd.s32 1, %s15
    %s25 = scalar_select %p22, %s24, %s15
    %p26 = scmp.ge.s32.totalorder %s25, 2
    %s27 = scalar_select %p26, 0, %s25
    %s28 = sadd.s32 %s15, %s16
    %p29 = scmp.lt.s32.totalorder %s28, 0
    %s30 = scalar_select %p29, %s28, 0
    %s31 = sadd.s32 %s27, %s23
    %p32 = scmp.lt.s32.totalorder %s31, 0
    %s33 = scalar_select %p32, %s31, 0
    %s34 = ssub.s32 %s30, %s33
    %p35 = scmp.eq.s32.totalorder %s34, 0
    %s37 = sadd.s32 %s36, 1
    %s38 = scalar_select %p35, %s36, %s37
    %p41 = pneg %p35
    %p42 = scmp.eq.s32.totalorder %s8, 1
    %p43 = por %p41, %p42
    %p44 = scmp.ne.s32.totalorder %s36, %s39
    %p45 = scmp.eq.s32.totalorder %s8, 0
    %p46 = por %p44, %p45
    %p47 = scmp.ne.s32.totalorder %s36, %s39
    %p48 = scmp.eq.s32.totalorder %s13, 1
    %p49 = por %p47, %p48
    %p50 = scmp.ne.s32.totalorder %s39, %s40
    %p51 = scmp.eq.s32.totalorder %s13, 0
    %p52 = por %p50, %p51
    %p53 = scmp.ne.s32.totalorder %s39, %s40
    %p54 = scmp.eq.s32.totalorder %s14, 1
    %p55 = por %p53, %p54
    %p57 = scmp.ne.s32.totalorder %s40, %s56
    %p58 = scmp.eq.s32.totalorder %s14, 0
    %p59 = por %p57, %p58
    %s60 = sadd.s32 %s15, %s16
    %p61 = scmp.lt.s32.totalorder %s60, 0
    %s62 = scalar_select %p61, %s60, 0
    %s63 = sadd.s32 %s27, %s23
    %p64 = scmp.lt.s32.totalorder %s63, 0
    %s65 = scalar_select %p64, %s63, 0
    %s66 = ssub.s32 %s62, %s65
    %p67 = scmp.eq.s32.totalorder %s66, 0
    %s69 = sadd.s32 %s68, 1
    %s70 = scalar_select %p67, %s68, %s69
    %p73 = pneg %p67
    %p74 = scmp.eq.s32.totalorder %s8, 1
    %p75 = por %p73, %p74
    %p76 = scmp.ne.s32.totalorder %s68, %s71
    %p77 = scmp.eq.s32.totalorder %s8, 0
    %p78 = por %p76, %p77
    %p79 = scmp.ne.s32.totalorder %s68, %s71
    %p80 = scmp.eq.s32.totalorder %s13, 1
    %p81 = por %p79, %p80
    %p82 = scmp.ne.s32.totalorder %s71, %s72
    %p83 = scmp.eq.s32.totalorder %s13, 0
    %p84 = por %p82, %p83
    %p85 = scmp.ne.s32.totalorder %s71, %s72
    %p86 = scmp.eq.s32.totalorder %s14, 1
    %p87 = por %p85, %p86
    %p89 = scmp.ne.s32.totalorder %s72, %s88
    %p90 = scmp.eq.s32.totalorder %s14, 0
    %p91 = por %p89, %p90
    %s92 = ssub.s32 %s15, %s27
    %p93 = scmp.eq.s32.totalorder %s92, 0
    %s95 = sadd.s32 %s94, 1
    %s96 = scalar_select %p93, %s94, %s95
    %p99 = pneg %p93
    %p100 = scmp.eq.s32.totalorder %s8, 1
    %p101 = por %p99, %p100
    %p102 = scmp.ne.s32.totalorder %s94, %s97
    %p103 = scmp.eq.s32.totalorder %s8, 0
    %p104 = por %p102, %p103
    %p105 = scmp.ne.s32.totalorder %s94, %s97
    %p106 = scmp.eq.s32.totalorder %s13, 1
    %p107 = por %p105, %p106
    %p108 = scmp.ne.s32.totalorder %s97, %s98
    %p109 = scmp.eq.s32.totalorder %s13, 0
    %p110 = por %p108, %p109
    %p111 = scmp.ne.s32.totalorder %s97, %s98
    %p112 = scmp.eq.s32.totalorder %s14, 1
    %p113 = por %p111, %p112
    %p115 = scmp.ne.s32.totalorder %s98, %s114
    %p116 = scmp.eq.s32.totalorder %s14, 0
    %p117 = por %p115, %p116
    %p118 = scmp.le.s32.totalorder 1, %s8
    %p119 = scmp.lt.s32.totalorder %s8, 3
    %p120 = pnand %p118, %p119
    %p121 = pneg %p120
    // Predicated region
    $region9: #{dice_score.1} parent=5 // pred_check
      _
    $region10: #{dice_score.1} parent=5 // pred_check_branch
      %123 = sbr.rel (%p120) target = $region12
    $region11: #{dice_score.1} parent=5 // pred_region
      %s124 = ssub.s32 %s8, 1
    $region12: #{dice_score.1} parent=5 // pred_fallthru
      _
    %p125 = scmp.lt.s32.totalorder %s8, 2
    // Predicated region
    $region13: #{dice_score.1} parent=5 // pred_check
      %p126 = pneg %p125
    $region14: #{dice_score.1} parent=5 // pred_check_branch
      %128 = sbr.rel (%p126) target = $region16
    $region15: #{dice_score.1} parent=5 // pred_region
      // Predicated region
      $region17: #{dice_score.1} parent=15 // pred_check
        %p129 = pneg %p46
      $region18: #{dice_score.1} parent=15 // pred_check_branch
        %131 = sbr.rel (%p129) target = $region20
      $region19: #{dice_score.1} parent=15 // pred_region
        %s132 = sadd.s32 %s15, %s16
        %p133 = scmp.lt.s32.totalorder %s132, 0
        %s134 = scalar_select %p133, %s132, 0
        %s135 = smul.u32 2, %s134
        %p136 = scmp.lt.s32.totalorder %s135, 1
        %s137 = scalar_select %p136, %s135, 1
        %s138 = smul.addr %s137, 8
        %s139 = scalar_lea.vmem %s0, %s138
        %s140 = sadd.s32 %s15, %s16
        %p141 = scmp.lt.s32.totalorder %s140, 0
        %s142 = scalar_select %p141, %s140, 0
        %s143 = smul.u32 2, %s142
      $region20: #{dice_score.1} parent=15 // pred_fallthru
        _
      // Predicated region
      $region21: #{dice_score.1} parent=15 // pred_check
        %p144 = pneg %p78
      $region22: #{dice_score.1} parent=15 // pred_check_branch
        %146 = sbr.rel (%p144) target = $region24
      $region23: #{dice_score.1} parent=15 // pred_region
        %s147 = sadd.s32 %s15, %s16
        %p148 = scmp.lt.s32.totalorder %s147, 0
        %s149 = scalar_select %p148, %s147, 0
        %s150 = smul.u32 2, %s149
        %p151 = scmp.lt.s32.totalorder %s150, 1
        %s152 = scalar_select %p151, %s150, 1
        %s153 = smul.addr %s152, 8
        %s154 = scalar_lea.vmem %s1, %s153
        %s155 = sadd.s32 %s15, %s16
        %p156 = scmp.lt.s32.totalorder %s155, 0
        %s157 = scalar_select %p156, %s155, 0
        %s158 = smul.u32 2, %s157
      $region24: #{dice_score.1} parent=15 // pred_fallthru
        _
    $region16: #{dice_score.1} parent=5 // pred_fallthru
      _
    %p159 = scmp.le.s32.totalorder 1, %s8
    %p160 = scmp.lt.s32.totalorder %s8, 3
    %p161 = pnand %p159, %p160
    %p162 = pneg %p161
    // Predicated region
    $region25: #{dice_score.1} parent=5 // pred_check
      _
    $region26: #{dice_score.1} parent=5 // pred_check_branch
      %164 = sbr.rel (%p161) target = $region28
    $region27: #{dice_score.1} parent=5 // pred_region
      %s165 = ssub.s32 %s8, 1
      %s166 = sadd.s32 %s17, %s18
      %p167 = scmp.lt.s32.totalorder %s166, 0
      %s168 = scalar_select %p167, %s166, 0
      %s169 = smul.u32 2, %s168
      %p170 = scmp.lt.s32.totalorder %s169, 1
      %s171 = scalar_select %p170, %s169, 1
      %s172 = smul.addr %s171, 8
      %s173 = scalar_lea.vmem %s0, %s172
      %p174 = pneg %p52
      %p175 = pneg %p49
      %s176 = sadd.s32 %s17, %s18
      %p177 = scmp.lt.s32.totalorder %s176, 0
      %s178 = scalar_select %p177, %s176, 0
      %s179 = smul.u32 2, %s178
      %p180 = scmp.lt.s32.totalorder %s179, 1
      %s181 = scalar_select %p180, %s179, 1
      %s182 = smul.addr %s181, 8
      %s183 = scalar_lea.vmem %s1, %s182
      %p184 = pneg %p84
      %p185 = pneg %p81
      %p186 = pneg %p110
      %p187 = pneg %p107
      %p188 = scmp.lt.s32.totalorder %s17, 1
      %s189 = scalar_select %p188, %s17, 1
      %s190 = smul.addr %s189, 4
      %s191 = scalar_lea.vmem %s2, %s190
      %s192 = sadd.s32 %s17, %s18
      %p193 = scmp.lt.s32.totalorder %s192, 0
      %s194 = scalar_select %p193, %s192, 0
      %s195 = smul.u32 2, %s194
      %p196 = scmp.lt.s32.totalorder %s195, 1
      %s197 = scalar_select %p196, %s195, 1
      %s198 = smul.addr %s197, 8
      %s199 = scalar_lea.vmem %s0, %s198
      %s200 = sadd.s32 %s17, %s18
      %p201 = scmp.lt.s32.totalorder %s200, 0
      %s202 = scalar_select %p201, %s200, 0
      %s203 = smul.u32 2, %s202
      %s204 = sadd.s32 %s17, %s18
      %p205 = scmp.lt.s32.totalorder %s204, 0
      %s206 = scalar_select %p205, %s204, 0
      %s207 = smul.u32 2, %s206
      %p208 = scmp.lt.s32.totalorder %s207, 1
      %s209 = scalar_select %p208, %s207, 1
      %s210 = smul.addr %s209, 8
      %s211 = scalar_lea.vmem %s1, %s210
      %s212 = sadd.s32 %s17, %s18
      %p213 = scmp.lt.s32.totalorder %s212, 0
      %s214 = scalar_select %p213, %s212, 0
      %s215 = smul.u32 2, %s214
      %p216 = scmp.lt.s32.totalorder %s17, 1
      %s217 = scalar_select %p216, %s17, 1
      %s218 = smul.addr %s217, 4
      %s219 = scalar_lea.vmem %s2, %s218
      %s220 = sadd.s32 %s17, %s18
      %p221 = scmp.eq.s32.totalorder %s18, 0
      // Predicated region
      $region29: #{dice_score.1} parent=27 // pred_check
        %p222 = pneg %p221
      $region30: #{dice_score.1} parent=27 // pred_check_branch
        %224 = sbr.rel (%p222) target = $region32
      $region31: #{dice_score.1} parent=27 // pred_region
        %225 = vst [vmem:[#allocation2] sm:$0xff] 0.0
        %226 = vst [vmem:[#allocation2 + $0x8] sm:$0xff] 0.0
        %227 = vst [vmem:[#allocation2 + $0x10] sm:$0xff] 0.0
      $region32: #{dice_score.1} parent=27 // pred_fallthru
        _
      %p228 = scmp.lt.s32.totalorder %s220, 1
      // Predicated region
      $region33: #{dice_score.1} parent=27 // pred_check
        %p229 = pneg %p228
      $region34: #{dice_score.1} parent=27 // pred_check_branch
        %231 = sbr.rel (%p229) target = $region36
      $region35: #{dice_score.1} parent=27 // pred_region
        %v232 = vld [vmem:[%s199] sm:$0xff]
        %v233 = vld [vmem:[%s199 + $0x8] sm:$0xff]
        %v234 = vld [vmem:[%s211] sm:$0xff]
        %v235 = vld [vmem:[%s211 + $0x8] sm:$0xff]
        %vm236 = vcmp.ge.f32.partialorder %v232, 0.0
        %vm237 = vcmp.ge.f32.partialorder %v233, 0.0
        %v238 = vsel %vm236, 1.0, 0.0
        %v239 = vsel %vm237, 1.0, 0.0
        %v240 = vmul.f32 %v238, %v234
        %v241 = vmul.f32 %v239, %v235
        %v242 = vadd.f32 %v240, %v241
        %v243 = vadd.f32 %v242, 0.0
        %v244 = vadd.f32 %v238, %v239
        %v245 = vadd.f32 %v244, 0.0
        %v246 = vadd.f32 %v234, %v235
        %v247 = vadd.f32 %v246, 0.0
        %v248 = vld [vmem:[#allocation2] sm:$0xff]
        %v249 = vadd.f32 %v248, %v243
        %250 = vst [vmem:[#allocation2] sm:$0xff] %v249
        %s251 = scalar_lea.vmem [#allocation2], 8
        %v252 = vld [vmem:[%s251] sm:$0xff]
        %v253 = vadd.f32 %v252, %v245
        %254 = vst [vmem:[%s251] sm:$0xff] %v253
        %s255 = scalar_lea.vmem [#allocation2], 16
        %v256 = vld [vmem:[%s255] sm:$0xff]
        %v257 = vadd.f32 %v256, %v247
        %258 = vst [vmem:[%s255] sm:$0xff] %v257
      $region36: #{dice_score.1} parent=27 // pred_fallthru
        _
      // Predicated region
      $region37: #{dice_score.1} parent=27 // pred_check
        %p259 = pneg %p221
      $region38: #{dice_score.1} parent=27 // pred_check_branch
        %261 = sbr.rel (%p259) target = $region40
      $region39: #{dice_score.1} parent=27 // pred_region
        %v262 = vld [vmem:[#allocation2] sm:$0xff]
        %v263 = vld [vmem:[#allocation2 + $0x8] sm:$0xff]
        %v264 = vld [vmem:[#allocation2 + $0x10] sm:$0xff]
        %v265 = vrot.slane %v262, 4
        %v266 = vadd.f32 %v262, %v265
        %v267 = vrot.slane %v266, 2
        %v268 = vadd.f32 %v266, %v267
        %v269 = vrot.slane %v268, 1
        %v270 = vadd.f32 %v268, %v269
        %v271 = vrot.slane %v263, 4
        %v272 = vadd.f32 %v263, %v271
        %v273 = vrot.slane %v272, 2
        %v274 = vadd.f32 %v272, %v273
        %v275 = vrot.slane %v274, 1
        %v276 = vadd.f32 %v274, %v275
        %v277 = vrot.slane %v264, 4
        %v278 = vadd.f32 %v264, %v277
        %v279 = vrot.slane %v278, 2
        %v280 = vadd.f32 %v278, %v279
        %v281 = vrot.slane %v280, 1
        %v282 = vadd.f32 %v280, %v281
        %vm286 = vcmask 1041409
        %v287 = vsel %vm286, %v276, %v270
        %vm288 = vcmask 1042434
        %v289 = vsel %vm288, %v282, %v287
        %291 = vst [vmem:[%s219] sm:$0x7] %v289
      $region40: #{dice_score.1} parent=27 // pred_fallthru
        _
      %p292 = scmp.lt.s32.totalorder %s17, 1
      %s293 = scalar_select %p292, %s17, 1
      %s294 = smul.addr %s293, 4
      %s295 = scalar_lea.vmem %s2, %s294
      // Predicated region
      $region41: #{dice_score.1} parent=27 // pred_check
        %p296 = pneg %p107
      $region42: #{dice_score.1} parent=27 // pred_check_branch
        %298 = sbr.rel (%p296) target = $region44
      $region43: #{dice_score.1} parent=27 // pred_region
        _
      $region44: #{dice_score.1} parent=27 // pred_fallthru
        _
    $region28: #{dice_score.1} parent=5 // pred_fallthru
      _
    %p299 = scmp.le.s32.totalorder 2, %s8
    // Predicated region
    $region45: #{dice_score.1} parent=5 // pred_check
      %p300 = pneg %p299
    $region46: #{dice_score.1} parent=5 // pred_check_branch
      %302 = sbr.rel (%p300) target = $region48
    $region47: #{dice_score.1} parent=5 // pred_region
      %s303 = ssub.s32 %s8, 2
      // Predicated region
      $region49: #{dice_score.1} parent=47 // pred_check
        %p304 = pneg %p113
      $region50: #{dice_score.1} parent=47 // pred_check_branch
        %306 = sbr.rel (%p304) target = $region52
      $region51: #{dice_score.1} parent=47 // pred_region
        %p307 = scmp.lt.s32.totalorder %s19, 1
        %s308 = scalar_select %p307, %s19, 1
        %s309 = smul.addr %s308, 4
        %s310 = scalar_lea.vmem %s2, %s309
      $region52: #{dice_score.1} parent=47 // pred_fallthru
        _
    $region48: #{dice_score.1} parent=5 // pred_fallthru
      _
  $region6: #{dice_score.1} parent=0 // loop_footer
    %s12 = sadd.s32 1, %s8
  $region7: #{dice_score.1} parent=0 // loop_footer_branch
    %7 = sbr.rel target = $region3
  $region8: #{dice_score.1} parent=0 // loop_exit
    _

</llo_original>
